<compile_context>
chip_gen: v7x
topology: tpu7x:2x2x1
jax: 0.10.0
libtpu: 0.0.40
codegen_flags: <defaults>
</compile_context>

<pallas_src>
import functools

import jax
import jax.numpy as jnp
from jax.experimental import pallas as pl
from jax.experimental.pallas import tpu as pltpu


def _squares_max_kernel(x_ref, o_ref, *, s_tile):
    # x_ref: (1, C, S_TILE, 128)   o_ref: (1, 1, P, 128)
    x = x_ref[0].astype(jnp.float32)                 # (C, S_TILE, 128)

    # Channel reduction = elementwise ops across C vreg tiles (VPU only).
    m = jnp.max(x, axis=0)                           # (S_TILE, 128)
    e = jnp.exp(x - m)                               # (C, S_TILE, 128)
    denom = jnp.sum(e, axis=0)                       # (S_TILE, 128)
    sq_num = jnp.sum(e * e, axis=0)                  # sum_c exp(2(x_c - m))

    inv = pl.reciprocal(denom, approx=False)         # max softmax prob = 1/denom
    # per-location term: (1 - max_prob) - 0.5 * sum_c p_c^2
    term = 1.0 - inv - 0.5 * (sq_num * inv * inv)    # (S_TILE, 128)

    # Reduce sublane groups to a (P,128) lane-dense partial (elementwise adds).
    if s_tile % 8 == 0:
        partial = jnp.sum(term.reshape(s_tile // 8, 8, 128), axis=0)  # (8, 128)
    else:
        partial = term                                                # (S_TILE, 128)

    o_ref[...] = partial[None, None, :, :]


def squares_max_loss(x):
    """x: (N, C, H, W) -> scalar, matching SquaresMaxLoss.forward."""
    N, C, H, W = x.shape
    HW = H * W
    x3 = x.reshape(N, C, HW)

    # Pick a lane-dense spatial tile: (S_TILE, 128) sublane x lane rows,
    # targeting ~2 MiB per input block (C * S_TILE * 128 * 4 bytes).
    s_raw = -(-HW // 128)
    if s_raw <= 8:
        s_tile = s_raw
    else:
        target = max(8, (2 * 1024 * 1024) // (C * 128 * 4))
        target = max(8, (target // 8) * 8)
        s_tile = min(target, ((s_raw + 7) // 8) * 8)
    s_pad = -(-s_raw // s_tile) * s_tile
    hw_pad = s_pad * 128
    if hw_pad != HW:
        x3 = jnp.pad(x3, ((0, 0), (0, 0), (0, hw_pad - HW)))
    x4 = x3.reshape(N, C, s_pad, 128)

    num_blocks = s_pad // s_tile
    p = 8 if s_tile % 8 == 0 else s_tile

    kernel = functools.partial(_squares_max_kernel, s_tile=s_tile)

    partials = pl.pallas_call(
        kernel,
        out_shape=jax.ShapeDtypeStruct((N, num_blocks, p, 128), jnp.float32),
        grid_spec=pltpu.PrefetchScalarGridSpec(
            num_scalar_prefetch=0,
            grid=(N, num_blocks),
            in_specs=[pl.BlockSpec((1, C, s_tile, 128),
                                   lambda i, j: (i, 0, j, 0))],
            out_specs=pl.BlockSpec((1, 1, p, 128),
                                   lambda i, j: (i, j, 0, 0)),
        ),
        compiler_params=pltpu.CompilerParams(
            dimension_semantics=("parallel", "parallel"),
            vmem_limit_bytes=32 * 1024 * 1024,
        ),
    )(x4)

    raw_sum = jnp.sum(partials)
    # Zero-padded spatial columns contribute the constant (1 - 1.5/C) each.
    n_pad_total = N * (hw_pad - HW)
    valid_sum = raw_sum - n_pad_total * (1.0 - 1.5 / C)
    return (valid_sum / (2.0 * N * HW)).astype(jnp.float32)


def _reference(x):
    # Pure-JAX reference of SquaresMaxLoss.forward.
    d = jax.nn.softmax(x, axis=1)
    maxloss = jnp.mean(1.0 - jnp.max(d, axis=1))
    sqloss = jnp.mean(-0.5 * jnp.sum(d * d, axis=1))
    return (maxloss + sqloss) / 2.0


if __name__ == "__main__":
    key = jax.random.PRNGKey(0)
    x = jax.random.normal(key, (2, 4, 16, 16), dtype=jnp.float32)

    loss = squares_max_loss(x)
    jax.block_until_ready(loss)

    ref = _reference(x)
    assert jnp.allclose(loss, ref, atol=1e-5, rtol=1e-5), (loss, ref)
    print("KERNEL_OK")
</pallas_src>

<mosaic_0001>
module attributes {stable_mosaic.version = 11 : i64} {
  func.func @_squares_max_kernel(%arg0: i32, %arg1: i32, %arg2: memref<1x4x2x128xf32, #tpu.memory_space<vmem>>, %arg3: memref<1x1x2x128xf32, #tpu.memory_space<vmem>>) attributes {dimension_semantics = [#tpu.dimension_semantics<parallel>, #tpu.dimension_semantics<parallel>], iteration_bounds = array<i64: 2, 1>, scalar_prefetch = 0 : i64, scratch_operands = 0 : i64, tpu.core_type = #tpu.core_type<tc>, window_params = [{transform_indices = @transform_0, window_bounds = array<i64: 1, 4, 2, 128>}, {transform_indices = @transform_1, window_bounds = array<i64: 1, 1, 2, 128>}]} {
    %c0 = arith.constant 0 : index
    %c0_0 = arith.constant 0 : index
    %c0_1 = arith.constant 0 : index
    %c0_2 = arith.constant 0 : index
    %0 = vector.load %arg2[%c0, %c0_0, %c0_1, %c0_2] : memref<1x4x2x128xf32, #tpu.memory_space<vmem>>, vector<1x4x2x128xf32>
    %1 = vector.shape_cast %0 : vector<1x4x2x128xf32> to vector<4x2x128xf32>
    %cst = arith.constant dense<0xFF800000> : vector<2x128xf32>
    %2 = vector.multi_reduction <maximumf>, %1, %cst [0] : vector<4x2x128xf32> to vector<2x128xf32>
    %3 = vector.shape_cast %2 : vector<2x128xf32> to vector<1x2x128xf32>
    %4 = vector.broadcast %3 : vector<1x2x128xf32> to vector<4x2x128xf32>
    %5 = arith.subf %1, %4 : vector<4x2x128xf32>
    %6 = math.exp %5 : vector<4x2x128xf32>
    %cst_3 = arith.constant dense<0.000000e+00> : vector<2x128xf32>
    %7 = vector.multi_reduction <add>, %6, %cst_3 [0] : vector<4x2x128xf32> to vector<2x128xf32>
    %8 = arith.mulf %6, %6 : vector<4x2x128xf32>
    %cst_4 = arith.constant dense<0.000000e+00> : vector<2x128xf32>
    %9 = vector.multi_reduction <add>, %8, %cst_4 [0] : vector<4x2x128xf32> to vector<2x128xf32>
    %10 = tpu.reciprocal %7 : vector<2x128xf32> -> vector<2x128xf32>
    %cst_5 = arith.constant 1.000000e+00 : f32
    %11 = vector.broadcast %cst_5 : f32 to vector<2x128xf32>
    %12 = arith.subf %11, %10 : vector<2x128xf32>
    %13 = arith.mulf %9, %10 : vector<2x128xf32>
    %14 = arith.mulf %13, %10 : vector<2x128xf32>
    %cst_6 = arith.constant 5.000000e-01 : f32
    %15 = vector.broadcast %cst_6 : f32 to vector<2x128xf32>
    %16 = arith.mulf %15, %14 : vector<2x128xf32>
    %17 = arith.subf %12, %16 : vector<2x128xf32>
    %18 = vector.shape_cast %17 : vector<2x128xf32> to vector<1x1x2x128xf32>
    %c0_7 = arith.constant 0 : index
    %c0_8 = arith.constant 0 : index
    %c0_9 = arith.constant 0 : index
    %c0_10 = arith.constant 0 : index
    %19 = vector.load %arg3[%c0_7, %c0_8, %c0_9, %c0_10] : memref<1x1x2x128xf32, #tpu.memory_space<vmem>>, vector<1x1x2x128xf32>
    tpu.vector_store %arg3[%c0_7, %c0_8, %c0_9, %c0_10], %18 {strides = array<i32>} : memref<1x1x2x128xf32, #tpu.memory_space<vmem>>, vector<1x1x2x128xf32>,
    return
  }
  func.func @transform_0(%arg0: i32, %arg1: i32) -> (i32, i32, i32, i32) {
    %c0_i32 = arith.constant 0 : i32
    %c0_i32_0 = arith.constant 0 : i32
    %c0_i32_1 = arith.constant 0 : i32
    return %arg0, %c0_i32, %arg1, %c0_i32_0 : i32, i32, i32, i32
  }
  func.func @transform_1(%arg0: i32, %arg1: i32) -> (i32, i32, i32, i32) {
    %c0_i32 = arith.constant 0 : i32
    %c0_i32_0 = arith.constant 0 : i32
    %c0_i32_1 = arith.constant 0 : i32
    return %arg0, %arg1, %c0_i32, %c0_i32_0 : i32, i32, i32, i32
  }
}

</mosaic_0001>

<llo_original>
// kernel: tpu_custom_call.1
$region0: #{tpu_custom_call.1}
  #allocation0 [shape = 'u32[]', space=smem, size = 0x4, offset = 0x4, fixed_abs, tag = 'smem constant byte address 0x4 - core index']
  #allocation1 [shape = 'u32[144,128]{1,0:T(1,128)}', space=vmem, size = 0x12000, scoped, tag = 'internal scratch']
  %s0 = inlined_call_operand.hbm [shape: f32[2,4,2,128], index: 0, kind: input, shape index: {}]
  %s1 = inlined_call_operand.hbm [shape: f32[2,1,2,128], index: 1, kind: output, shape index: {}]
  %s2 = sld [smem:[#allocation0]]
  $region41: #{tpu_custom_call.1} parent=0
    _
  %s4 = ssub.s32 1, %s2
  %s5 = scalar_select 0, %s4, %s2
  $region1: #{tpu_custom_call.1} parent=0
    #allocation2 [shape = 'u8[8192]{0}', space=vmem, size = 0x2000, scoped, tag = 'input window, operand 0']
    #allocation3 [shape = 's32[2]{0}', space=sflag, size = 0x8, scoped, tag = 'scoped memory for tpu_custom_call.1']
    #allocation4 [shape = 's32[2]{0}', space=sflag, size = 0x8, scoped, tag = 'scoped memory for tpu_custom_call.1']
    #allocation5 [shape = 'u8[2048]{0}', space=vmem, size = 0x800, scoped, tag = 'output window, operand 0']
    %6 = vsyncpa [#allocation3], 0
    %s7 = scalar_lea.sflag [#allocation3], 1
    %8 = vsyncpa %s7, 0
    %9 = vsyncpa [#allocation4], 0
    %s10 = scalar_lea.sflag [#allocation4], 1
    %11 = vsyncpa %s10, 0
    loop: start=0, step=1, limit=4
    $region2: #{tpu_custom_call.1} parent=1 // loop_pre_header
      _
    $region3: #{tpu_custom_call.1} parent=1 // loop_header
      %s13 = sphi 0, %s17
      %p14 = scmp.ge.s32.totalorder %s13, 4
      %s20 = sphi 0, %s32
      %s21 = sphi 0, %s28
      %s22 = sphi 0, %s20
      %s23 = sphi 0, %s21
      %s24 = sphi 0, %s22
      %s25 = sphi 0, %s23
      %s37 = sphi 0, %s39
      %s40 = sphi 0, %s37
      %s41 = sphi 0, %s40
      %s57 = sphi 0, %s41
      %s65 = sphi 0, %s67
      %s68 = sphi 0, %s65
      %s69 = sphi 0, %s68
      %s85 = sphi 0, %s69
    $region4: #{tpu_custom_call.1} parent=1 // loop_header_branch
      %16 = sbr.rel (%p14) target = $region8
    $region5: #{tpu_custom_call.1} parent=1 // loop_body
      %s18 = ssub.s32 %s13, 1
      %s19 = ssub.s32 %s13, 2
      %s26 = sadd.s32 1, %s21
      %p27 = scmp.ge.s32.totalorder %s26, 1
      %s28 = scalar_select %p27, 0, %s26
      %s29 = sadd.s32 1, %s20
      %s30 = scalar_select %p27, %s29, %s20
      %p31 = scmp.ge.s32.totalorder %s30, 2
      %s32 = scalar_select %p31, 0, %s30
      %s33 = ssub.s32 %s20, %s32
      %s34 = ssub.s32 %s21, %s28
      %s35 = sor.u32 %s33, %s34
      %p36 = scmp.eq.s32.totalorder %s35, 0
      %s38 = sadd.s32 %s37, 1
      %s39 = scalar_select %p36, %s37, %s38
      %p42 = pneg %p36
      %p43 = scmp.eq.s32.totalorder %s13, 1
      %p44 = por %p42, %p43
      %p45 = scmp.ne.s32.totalorder %s37, %s40
      %p46 = scmp.eq.s32.totalorder %s13, 0
      %p47 = por %p45, %p46
      %p48 = scmp.ne.s32.totalorder %s37, %s40
      %p49 = scmp.eq.s32.totalorder %s18, 1
      %p50 = por %p48, %p49
      %p51 = scmp.ne.s32.totalorder %s40, %s41
      %p52 = scmp.eq.s32.totalorder %s18, 0
      %p53 = por %p51, %p52
      %p54 = scmp.ne.s32.totalorder %s40, %s41
      %p55 = scmp.eq.s32.totalorder %s19, 1
      %p56 = por %p54, %p55
      %p58 = scmp.ne.s32.totalorder %s41, %s57
      %p59 = scmp.eq.s32.totalorder %s19, 0
      %p60 = por %p58, %p59
      %s61 = ssub.s32 %s20, %s32
      %s62 = ssub.s32 %s21, %s28
      %s63 = sor.u32 %s61, %s62
      %p64 = scmp.eq.s32.totalorder %s63, 0
      %s66 = sadd.s32 %s65, 1
      %s67 = scalar_select %p64, %s65, %s66
      %p70 = pneg %p64
      %p71 = scmp.eq.s32.totalorder %s13, 1
      %p72 = por %p70, %p71
      %p73 = scmp.ne.s32.totalorder %s65, %s68
      %p74 = scmp.eq.s32.totalorder %s13, 0
      %p75 = por %p73, %p74
      %p76 = scmp.ne.s32.totalorder %s65, %s68
      %p77 = scmp.eq.s32.totalorder %s18, 1
      %p78 = por %p76, %p77
      %p79 = scmp.ne.s32.totalorder %s68, %s69
      %p80 = scmp.eq.s32.totalorder %s18, 0
      %p81 = por %p79, %p80
      %p82 = scmp.ne.s32.totalorder %s68, %s69
      %p83 = scmp.eq.s32.totalorder %s19, 1
      %p84 = por %p82, %p83
      %p86 = scmp.ne.s32.totalorder %s69, %s85
      %p87 = scmp.eq.s32.totalorder %s19, 0
      %p88 = por %p86, %p87
      %p89 = scmp.le.s32.totalorder 1, %s13
      %p90 = scmp.lt.s32.totalorder %s13, 3
      %p91 = pnand %p89, %p90
      %p92 = pneg %p91
      // Predicated region
      $region9: #{tpu_custom_call.1} parent=5 // pred_check
        _
      $region10: #{tpu_custom_call.1} parent=5 // pred_check_branch
        %94 = sbr.rel (%p91) target = $region12
      $region11: #{tpu_custom_call.1} parent=5 // pred_region
        %s95 = ssub.s32 %s13, 1
      $region12: #{tpu_custom_call.1} parent=5 // pred_fallthru
        _
      %p96 = scmp.lt.s32.totalorder %s13, 2
      // Predicated region
      $region13: #{tpu_custom_call.1} parent=5 // pred_check
        %p97 = pneg %p96
      $region14: #{tpu_custom_call.1} parent=5 // pred_check_branch
        %99 = sbr.rel (%p97) target = $region16
      $region15: #{tpu_custom_call.1} parent=5 // pred_region
        // Predicated region
        $region17: #{tpu_custom_call.1} parent=15 // pred_check
          %p100 = pneg %p47
        $region18: #{tpu_custom_call.1} parent=15 // pred_check_branch
          %102 = sbr.rel (%p100) target = $region20
        $region19: #{tpu_custom_call.1} parent=15 // pred_region
          %s103 = sand.u32 %s37, 1
          %s104 = scalar_lea.sflag [#allocation3], %s103
          %s105 = sand.u32 %s37, 1
          %s106 = smul.addr %s105, 8
          %s107 = scalar_lea.vmem [#allocation2], %s106
          %s109 = ssub.s32 128, 128
          %110 = vsyncadd %s104, %s109
          %s111 = smul.addr %s20, 4
          %s112 = sadd.s32 %s21, %s111
          %s113 = smul.addr %s112, 32
          %s114 = scalar_lea.hbm %s0, %s113
          %s115 = sshll.u32 %s107, 4
          %s116 = int_to_ptr.vmem [resolvable:$true] %s115
          %121 = dma.hbm_to_vmem [thread:$0]  %s114, 128, %s116, %s104, 32, 32, 2
        $region20: #{tpu_custom_call.1} parent=15 // pred_fallthru
          _
      $region16: #{tpu_custom_call.1} parent=5 // pred_fallthru
        _
      %p122 = scmp.le.s32.totalorder 1, %s13
      %p123 = scmp.lt.s32.totalorder %s13, 3
      %p124 = pnand %p122, %p123
      %p125 = pneg %p124
      // Predicated region
      $region21: #{tpu_custom_call.1} parent=5 // pred_check
        _
      $region22: #{tpu_custom_call.1} parent=5 // pred_check_branch
        %127 = sbr.rel (%p124) target = $region24
      $region23: #{tpu_custom_call.1} parent=5 // pred_region
        %s128 = ssub.s32 %s13, 1
        %s129 = sand.u32 %s40, 1
        %s130 = scalar_lea.sflag [#allocation3], %s129
        %s131 = sand.u32 %s40, 1
        %s132 = smul.addr %s131, 8
        %s133 = scalar_lea.vmem [#allocation2], %s132
        // Predicated region
        $region25: #{tpu_custom_call.1} parent=23 // pred_check
          %p134 = pneg %p53
        $region26: #{tpu_custom_call.1} parent=23 // pred_check_branch
          %136 = sbr.rel (%p134) target = $region28
        $region27: #{tpu_custom_call.1} parent=23 // pred_region
          %137 = dma.done %s130, 128
        $region28: #{tpu_custom_call.1} parent=23 // pred_fallthru
          _
        %s138 = sand.u32 %s40, 1
        %s139 = scalar_lea.sflag [#allocation3], %s138
        %s140 = sand.u32 %s40, 1
        %s141 = smul.addr %s140, 8
        %s142 = scalar_lea.vmem [#allocation2], %s141
        %p143 = pneg %p53
        %p144 = pneg %p50
        %p145 = pneg %p81
        %p146 = pneg %p78
        %s147 = sand.u32 %s68, 1
        %s148 = scalar_lea.sflag [#allocation4], %s147
        %s149 = sand.u32 %s68, 1
        %s150 = smul.addr %s149, 2
        %s151 = scalar_lea.vmem [#allocation5], %s150
        %v152 = vld [vmem:[%s133] sm:$0x3]
        %v153 = vld [vmem:[%s133 + $0x2] sm:$0x3]
        %v154 = vld [vmem:[%s133 + $0x4] sm:$0x3]
        %v155 = vld [vmem:[%s133 + $0x6] sm:$0x3]
        %vm156 = vcmask 1041408
        %v157 = vsel %vm156, %v152, -inf
        %v158 = vsel %vm156, %v153, -inf
        %v159 = vsel %vm156, %v154, -inf
        %v160 = vsel %vm156, %v155, -inf
        %v161 = vmax.f32 %v157, %v158
        %v162 = vmax.f32 %v159, %v160
        %v163 = vmax.f32 %v161, %v162
        %v164 = vsub.f32 %v152, %v163
        %v165 = vsub.f32 %v153, %v163
        %v166 = vsub.f32 %v154, %v163
        %v167 = vsub.f32 %v155, %v163
        %v168 = vmul.f32 %v164, 1.442695
        %v169 = vpow.pop %v168
        %v170 = vmul.f32 %v165, 1.442695
        %v171 = vpow.pop %v170
        %v172 = vmul.f32 %v166, 1.442695
        %v173 = vpow.pop %v172
        %v174 = vmul.f32 %v167, 1.442695
        %v175 = vpow.pop %v174
        %v176 = vsel %vm156, %v169, 0.0
        %v177 = vsel %vm156, %v171, 0.0
        %v178 = vadd.f32 %v176, %v177
        %v179 = vsel %vm156, %v173, 0.0
        %v180 = vadd.f32 %v178, %v179
        %v181 = vsel %vm156, %v175, 0.0
        %v182 = vadd.f32 %v180, %v181
        %v183 = vmul.f32 %v169, %v169
        %v184 = vmul.f32 %v171, %v171
        %v185 = vmul.f32 %v173, %v173
        %v186 = vmul.f32 %v175, %v175
        %v187 = vsel %vm156, %v183, 0.0
        %v188 = vsel %vm156, %v184, 0.0
        %v189 = vadd.f32 %v187, %v188
        %v190 = vsel %vm156, %v185, 0.0
        %v191 = vadd.f32 %v189, %v190
        %v192 = vsel %vm156, %v186, 0.0
        %v193 = vadd.f32 %v191, %v192
        %v194 = vrcp.pop %v182
        %v195 = vsub.f32 1.0, %v194
        %v196 = vmul.f32 %v193, %v194
        %v197 = vmul.f32 %v196, %v194
        %v198 = vmul.f32 %v197, 0.5
        %v199 = vsub.f32 %v195, %v198
        %200 = vst [vmem:[%s151] sm:$0x3] %v199
        %s201 = sand.u32 %s68, 1
        %s202 = scalar_lea.sflag [#allocation4], %s201
        %s203 = sand.u32 %s68, 1
        %s204 = smul.addr %s203, 2
        %s205 = scalar_lea.vmem [#allocation5], %s204
        // Predicated region
        $region29: #{tpu_custom_call.1} parent=23 // pred_check
          %p206 = pneg %p78
        $region30: #{tpu_custom_call.1} parent=23 // pred_check_branch
          %208 = sbr.rel (%p206) target = $region32
        $region31: #{tpu_custom_call.1} parent=23 // pred_region
          %s210 = ssub.s32 32, 32
          %211 = vsyncadd %s202, %s210
          %s212 = sadd.s32 %s23, %s22
          %s213 = smul.addr %s212, 32
          %s214 = scalar_lea.hbm %s1, %s213
          %s216 = sshll.u32 %s205, 4
          %s217 = int_to_ptr.vmem [resolvable:$true] %s216
          %219 = dma.vmem_to_hbm [thread:$0]  %s217, 32, %s214, %s202
        $region32: #{tpu_custom_call.1} parent=23 // pred_fallthru
          _
      $region24: #{tpu_custom_call.1} parent=5 // pred_fallthru
        _
      %p220 = scmp.le.s32.totalorder 2, %s13
      // Predicated region
      $region33: #{tpu_custom_call.1} parent=5 // pred_check
        %p221 = pneg %p220
      $region34: #{tpu_custom_call.1} parent=5 // pred_check_branch
        %223 = sbr.rel (%p221) target = $region36
      $region35: #{tpu_custom_call.1} parent=5 // pred_region
        %s224 = ssub.s32 %s13, 2
        // Predicated region
        $region37: #{tpu_custom_call.1} parent=35 // pred_check
          %p225 = pneg %p84
        $region38: #{tpu_custom_call.1} parent=35 // pred_check_branch
          %227 = sbr.rel (%p225) target = $region40
        $region39: #{tpu_custom_call.1} parent=35 // pred_region
          %s228 = sand.u32 %s69, 1
          %s229 = scalar_lea.sflag [#allocation4], %s228
          %s230 = sand.u32 %s69, 1
          %s231 = smul.addr %s230, 2
          %s232 = scalar_lea.vmem [#allocation5], %s231
          %233 = dma.done %s229, 32
        $region40: #{tpu_custom_call.1} parent=35 // pred_fallthru
          _
      $region36: #{tpu_custom_call.1} parent=5 // pred_fallthru
        _
    $region6: #{tpu_custom_call.1} parent=1 // loop_footer
      %s17 = sadd.s32 1, %s13
    $region7: #{tpu_custom_call.1} parent=1 // loop_footer_branch
      %12 = sbr.rel target = $region3
    $region8: #{tpu_custom_call.1} parent=1 // loop_exit
      _
    %234 = vsyncpa [#allocation3], 1
    %s235 = scalar_lea.sflag [#allocation3], 1
    %236 = vsyncpa %s235, 1
    %237 = vsyncpa [#allocation4], 1
    %s238 = scalar_lea.sflag [#allocation4], 1
    %239 = vsyncpa %s238, 1

</llo_original>
